<compile_context>
chip_gen: v7x
topology: tpu7x:2x2x1
jax: 0.10.0
libtpu: 0.0.40
codegen_flags: <defaults>
</compile_context>

<pallas_src>
import functools

import jax
import jax.numpy as jnp
from jax.experimental import pallas as pl
from jax.experimental.pallas import tpu as pltpu

_EPS = 1e-5  # InstanceNorm2d default eps


def _elu(y):
    # ELU(alpha=1). exp input is clamped so the unselected branch never
    # evaluates to inf (expm1 not used to stay on the known-good exp lowering).
    return jnp.where(y > 0.0, y, jnp.exp(jnp.minimum(y, 0.0)) - 1.0)


# ---------------------------------------------------------------------------
# Pallas kernels
# ---------------------------------------------------------------------------
def _conv_in_elu_kernel(xp_ref, w_ref, o_ref):
    """Fused 3x3 conv (single matmul) + InstanceNorm2d(affine=False) + ELU.

    xp_ref: (1, 9*Cin, HW)  transposed im2col patches for one sample
    w_ref : (Cout, 9*Cin)   conv weights, tap-major contraction dim
    o_ref : (1, Cout, HW)   spatial on the lane axis (lane-dense stores)
    """
    acc = jnp.dot(w_ref[...], xp_ref[0], preferred_element_type=jnp.float32)
    mean = jnp.mean(acc, axis=-1, keepdims=True)        # per channel, over HW
    cen = acc - mean
    var = jnp.mean(cen * cen, axis=-1, keepdims=True)   # biased variance
    o_ref[0] = _elu(cen * jax.lax.rsqrt(var + _EPS))


def _conv_in_add_elu_kernel(xp_ref, res_ref, w_ref, o_ref):
    """Last ConvBN fused with the UpConcat tail: ELU(ELU(IN(conv(x))) + res)."""
    acc = jnp.dot(w_ref[...], xp_ref[0], preferred_element_type=jnp.float32)
    mean = jnp.mean(acc, axis=-1, keepdims=True)
    cen = acc - mean
    var = jnp.mean(cen * cen, axis=-1, keepdims=True)
    convbn = _elu(cen * jax.lax.rsqrt(var + _EPS))      # last ConvBN output
    o_ref[0] = _elu(convbn + res_ref[0])                # relu2(out + xcat)


# ---------------------------------------------------------------------------
# Wrappers around pallas_call
# ---------------------------------------------------------------------------
def _im2col_T(x_nchw):
    """NCHW -> (N, 9*C, H*W) patches for a padding=1 3x3 conv (lane-dense)."""
    n, c, h, w = x_nchw.shape
    xp = jnp.pad(x_nchw, ((0, 0), (0, 0), (1, 1), (1, 1)))
    taps = [xp[:, :, kh:kh + h, kw:kw + w].reshape(n, c, h * w)
            for kh in range(3) for kw in range(3)]
    return jnp.concatenate(taps, axis=1)


_PARALLEL_N = pltpu.CompilerParams(dimension_semantics=("parallel",))


def conv3x3_in_elu(x_nchw, w_flat):
    """ConvBN block: ELU(InstanceNorm(conv3x3(x))). x: NCHW, w_flat: (Cout, 9*Cin)."""
    n, cin, h, w = x_nchw.shape
    cout = w_flat.shape[0]
    hw = h * w
    xp = _im2col_T(x_nchw)                              # (N, 9*Cin, HW)
    out = pl.pallas_call(
        _conv_in_elu_kernel,
        out_shape=jax.ShapeDtypeStruct((n, cout, hw), jnp.float32),
        grid_spec=pltpu.PrefetchScalarGridSpec(
            num_scalar_prefetch=0,
            grid=(n,),
            in_specs=[
                pl.BlockSpec((1, 9 * cin, hw), lambda i: (i, 0, 0)),
                pl.BlockSpec((cout, 9 * cin), lambda i: (0, 0)),
            ],
            out_specs=pl.BlockSpec((1, cout, hw), lambda i: (i, 0, 0)),
        ),
        compiler_params=_PARALLEL_N,
    )(xp, w_flat)
    return out.reshape(n, cout, h, w)


def conv3x3_in_add_elu(x_nchw, res_nchw, w_flat):
    """Last ConvBN fused with the residual: ELU(ELU(IN(conv(x))) + res)."""
    n, cin, h, w = x_nchw.shape
    cout = w_flat.shape[0]
    hw = h * w
    xp = _im2col_T(x_nchw)
    res = res_nchw.reshape(n, cout, hw)
    out = pl.pallas_call(
        _conv_in_add_elu_kernel,
        out_shape=jax.ShapeDtypeStruct((n, cout, hw), jnp.float32),
        grid_spec=pltpu.PrefetchScalarGridSpec(
            num_scalar_prefetch=0,
            grid=(n,),
            in_specs=[
                pl.BlockSpec((1, 9 * cin, hw), lambda i: (i, 0, 0)),
                pl.BlockSpec((1, cout, hw), lambda i: (i, 0, 0)),
                pl.BlockSpec((cout, 9 * cin), lambda i: (0, 0)),
            ],
            out_specs=pl.BlockSpec((1, cout, hw), lambda i: (i, 0, 0)),
        ),
        compiler_params=_PARALLEL_N,
    )(xp, res, w_flat)
    return out.reshape(n, cout, h, w)


# ---------------------------------------------------------------------------
# Plain-JAX glue (matches PyTorch semantics exactly)
# ---------------------------------------------------------------------------
def upsample2x_bilinear(x):
    """nn.Upsample(scale_factor=2, mode='bilinear', align_corners=False), NCHW.

    Slice/concat based — no gathers (jnp.take lowers poorly on TPU).
    """
    def up1d(a, axis):
        n = a.shape[axis]
        sl = lambda s, e: jax.lax.slice_in_dim(a, s, e, axis=axis)
        prev = jnp.concatenate([sl(0, 1), sl(0, n - 1)], axis=axis)
        nxt = jnp.concatenate([sl(1, n), sl(n - 1, n)], axis=axis)
        even = 0.75 * a + 0.25 * prev      # output index 2k   -> src k - 0.25
        odd = 0.75 * a + 0.25 * nxt        # output index 2k+1 -> src k + 0.25
        out = jnp.stack([even, odd], axis=axis + 1)
        shape = list(a.shape)
        shape[axis] = 2 * n
        return out.reshape(shape)

    return up1d(up1d(x, 2), 3)


def match_tensor(out, refer_hw):
    """Center pad/crop H and W of `out` (NCHW) to `refer_hw` (PyTorch match_tensor)."""
    sh, sw = refer_hw
    _, _, h, w = out.shape
    if sw >= w:
        pad = sw - w
        l = pad // 2
        out = jnp.pad(out, ((0, 0), (0, 0), (0, 0), (l, pad - l)))
    else:
        crop = w - sw
        l = crop // 2
        out = out[:, :, :, l:l + sw]
    if sh >= h:
        pad = sh - h
        l = pad // 2
        out = jnp.pad(out, ((0, 0), (0, 0), (l, pad - l), (0, 0)))
    else:
        crop = h - sh
        l = crop // 2
        out = out[:, :, l:l + sh, :]
    return out


def init_params(key, in_chans, hid_chans, out_chans, n_convs):
    """Deterministic synthetic conv weights, pre-flattened to (Cout, 9*Cin).

    Conv biases are intentionally omitted: InstanceNorm2d(affine=False)
    subtracts the per-channel mean, which cancels a per-channel bias exactly,
    so they are dead compute + a dead DMA.
    """
    ks = jax.random.split(key, 1 + n_convs)

    def conv_w(k, cin, cout):
        w_oihw = 0.1 * jax.random.normal(k, (cout, cin, 3, 3), jnp.float32)
        # (Cout,Cin,kh,kw) -> (Cout,kh,kw,Cin) -> (Cout, 9*Cin): contraction
        # index (kh*3 + kw)*Cin + ci matches _im2col_T's tap ordering.
        return jnp.transpose(w_oihw, (0, 2, 3, 1)).reshape(cout, 9 * cin)

    return {
        "up_w": conv_w(ks[0], in_chans, hid_chans),
        "ops": [conv_w(ks[1 + i], out_chans, out_chans) for i in range(n_convs)],
    }


def upconcat_forward(params, x_nchw, skipx_nchw):
    """UpConcat.forward in eval mode. NCHW in / NCHW out, like PyTorch."""
    out = upsample2x_bilinear(x_nchw)
    out = conv3x3_in_elu(out, params["up_w"])          # relu1(norm1(up_conv(.)))
    out = match_tensor(out, skipx_nchw.shape[2:])
    xcat = jnp.concatenate([out, skipx_nchw], axis=1)

    ops = params["ops"]
    if not ops:                                        # nConvs == 0 edge case
        return _elu(2.0 * xcat)
    out = xcat
    for w in ops[:-1]:
        out = conv3x3_in_elu(out, w)
    return conv3x3_in_add_elu(out, xcat, ops[-1])      # relu2(ops(xcat) + xcat)


# ---------------------------------------------------------------------------
# Pure-JAX reference (same math, XLA matmul path) for a correctness check
# ---------------------------------------------------------------------------
def _ref_convbn(x_nchw, w_flat):
    n, _, h, w = x_nchw.shape
    cout = w_flat.shape[0]
    xp = _im2col_T(x_nchw)
    acc = jnp.einsum("ok,nkp->nop", w_flat, xp,
                     precision=jax.lax.Precision.HIGHEST)
    mean = jnp.mean(acc, axis=-1, keepdims=True)
    cen = acc - mean
    var = jnp.mean(cen * cen, axis=-1, keepdims=True)
    return _elu(cen * jax.lax.rsqrt(var + _EPS)).reshape(n, cout, h, w)


def _ref_forward(params, x_nchw, skipx_nchw):
    out = upsample2x_bilinear(x_nchw)
    out = _ref_convbn(out, params["up_w"])
    out = match_tensor(out, skipx_nchw.shape[2:])
    xcat = jnp.concatenate([out, skipx_nchw], axis=1)
    out = xcat
    for w in params["ops"]:
        out = _ref_convbn(out, w)
    return _elu(out + xcat)


# ---------------------------------------------------------------------------
if __name__ == "__main__":
    key = jax.random.PRNGKey(0)
    k_x, k_skip, k_p = jax.random.split(key, 3)

    # inChans=4, hidChans=4, skip channels=4, outChans=hid+skip=8, nConvs=2
    N, IN_C, HID_C, SKIP_C, OUT_C, N_CONVS = 2, 4, 4, 4, 8, 2
    H, W = 8, 8  # skip feature map is 2x larger (stride=2 upsample)

    x = jax.random.normal(k_x, (N, IN_C, H, W), jnp.float32)            # NCHW
    skipx = jax.random.normal(k_skip, (N, SKIP_C, 2 * H, 2 * W), jnp.float32)
    params = init_params(k_p, IN_C, HID_C, OUT_C, N_CONVS)

    fwd = jax.jit(functools.partial(upconcat_forward, params))
    out = jax.block_until_ready(fwd(x, skipx))

    assert out.shape == (N, OUT_C, 2 * H, 2 * W), out.shape
    assert jnp.all(jnp.isfinite(out))

    ref = jax.jit(functools.partial(_ref_forward, params))(x, skipx)
    err = float(jnp.max(jnp.abs(out - ref)))
    assert err < 5e-3, err

    print("KERNEL_OK")
</pallas_src>

<mosaic_0001>
module attributes {stable_mosaic.version = 11 : i64} {
  func.func @_conv_in_elu_kernel(%arg0: i32, %arg1: memref<1x36x256xf32, #tpu.memory_space<vmem>>, %arg2: memref<4x36xf32, #tpu.memory_space<vmem>>, %arg3: memref<1x4x256xf32, #tpu.memory_space<vmem>>) attributes {dimension_semantics = [#tpu.dimension_semantics<parallel>], iteration_bounds = array<i64: 2>, scalar_prefetch = 0 : i64, scratch_operands = 0 : i64, tpu.core_type = #tpu.core_type<tc>, window_params = [{transform_indices = @transform_0, window_bounds = array<i64: 1, 36, 256>}, {pipeline_mode = #tpu.pipeline_mode<synchronous>, transform_indices = @transform_1, window_bounds = array<i64: 4, 36>}, {transform_indices = @transform_2, window_bounds = array<i64: 1, 4, 256>}]} {
    %c0 = arith.constant 0 : index
    %c0_0 = arith.constant 0 : index
    %0 = vector.load %arg2[%c0, %c0_0] : memref<4x36xf32, #tpu.memory_space<vmem>>, vector<4x36xf32>
    %c0_1 = arith.constant 0 : index
    %c0_2 = arith.constant 0 : index
    %c0_3 = arith.constant 0 : index
    %1 = vector.load %arg1[%c0_1, %c0_2, %c0_3] : memref<1x36x256xf32, #tpu.memory_space<vmem>>, vector<1x36x256xf32>
    %2 = vector.shape_cast %1 : vector<1x36x256xf32> to vector<36x256xf32>
    %cst = arith.constant dense<0.000000e+00> : vector<4x256xf32>
    %3 = tpu.matmul %0, %2, %cst {dimension_numbers = #tpu.dot_dimension_numbers<[1], [0], [0], [1], [0, 0, 1, 1], [], []>} : vector<4x36xf32>, vector<36x256xf32>, vector<4x256xf32> -> vector<4x256xf32>
    %cst_4 = arith.constant dense<0.000000e+00> : vector<4xf32>
    %4 = vector.multi_reduction <add>, %3, %cst_4 [1] : vector<4x256xf32> to vector<4xf32>
    %5 = vector.shape_cast %4 : vector<4xf32> to vector<4x1xf32>
    %cst_5 = arith.constant 2.560000e+02 : f32
    %6 = vector.broadcast %cst_5 : f32 to vector<4x1xf32>
    %7 = arith.divf %5, %6 : vector<4x1xf32>
    %8 = vector.broadcast %7 : vector<4x1xf32> to vector<4x256xf32>
    %9 = arith.subf %3, %8 : vector<4x256xf32>
    %10 = arith.mulf %9, %9 : vector<4x256xf32>
    %cst_6 = arith.constant dense<0.000000e+00> : vector<4xf32>
    %11 = vector.multi_reduction <add>, %10, %cst_6 [1] : vector<4x256xf32> to vector<4xf32>
    %12 = vector.shape_cast %11 : vector<4xf32> to vector<4x1xf32>
    %cst_7 = arith.constant 2.560000e+02 : f32
    %13 = vector.broadcast %cst_7 : f32 to vector<4x1xf32>
    %14 = arith.divf %12, %13 : vector<4x1xf32>
    %cst_8 = arith.constant 9.99999974E-6 : f32
    %15 = vector.broadcast %cst_8 : f32 to vector<4x1xf32>
    %16 = arith.addf %14, %15 : vector<4x1xf32>
    %17 = math.rsqrt %16 : vector<4x1xf32>
    %18 = vector.broadcast %17 : vector<4x1xf32> to vector<4x256xf32>
    %19 = arith.mulf %9, %18 : vector<4x256xf32>
    %cst_9 = arith.constant 0.000000e+00 : f32
    %20 = vector.broadcast %cst_9 : f32 to vector<4x256xf32>
    %21 = arith.cmpf ogt, %19, %20 : vector<4x256xf32>
    %cst_10 = arith.constant 0.000000e+00 : f32
    %22 = vector.broadcast %cst_10 : f32 to vector<4x256xf32>
    %23 = arith.minimumf %19, %22 : vector<4x256xf32>
    %24 = math.exp %23 : vector<4x256xf32>
    %cst_11 = arith.constant 1.000000e+00 : f32
    %25 = vector.broadcast %cst_11 : f32 to vector<4x256xf32>
    %26 = arith.subf %24, %25 : vector<4x256xf32>
    %27 = arith.select %21, %19, %26 : vector<4x256xi1>, vector<4x256xf32>
    %c0_12 = arith.constant 0 : index
    %c0_13 = arith.constant 0 : index
    %c0_14 = arith.constant 0 : index
    %28 = vector.load %arg3[%c0_12, %c0_13, %c0_14] : memref<1x4x256xf32, #tpu.memory_space<vmem>>, vector<1x4x256xf32>
    %29 = vector.shape_cast %28 : vector<1x4x256xf32> to vector<4x256xf32>
    %30 = vector.shape_cast %27 : vector<4x256xf32> to vector<1x4x256xf32>
    tpu.vector_store %arg3[%c0_12, %c0_13, %c0_14], %30 {strides = array<i32>} : memref<1x4x256xf32, #tpu.memory_space<vmem>>, vector<1x4x256xf32>,
    return
  }
  func.func @transform_0(%arg0: i32) -> (i32, i32, i32) {
    %c0_i32 = arith.constant 0 : i32
    %c0_i32_0 = arith.constant 0 : i32
    %c0_i32_1 = arith.constant 0 : i32
    return %arg0, %c0_i32, %c0_i32_0 : i32, i32, i32
  }
  func.func @transform_1(%arg0: i32) -> (i32, i32) {
    %c0_i32 = arith.constant 0 : i32
    %c0_i32_0 = arith.constant 0 : i32
    %c0_i32_1 = arith.constant 0 : i32
    return %c0_i32, %c0_i32_0 : i32, i32
  }
  func.func @transform_2(%arg0: i32) -> (i32, i32, i32) {
    %c0_i32 = arith.constant 0 : i32
    %c0_i32_0 = arith.constant 0 : i32
    %c0_i32_1 = arith.constant 0 : i32
    return %arg0, %c0_i32, %c0_i32_0 : i32, i32, i32
  }
}

module attributes {stable_mosaic.version = 11 : i64} {
  func.func @_conv_in_elu_kernel(%arg0: i32, %arg1: memref<1x72x256xf32, #tpu.memory_space<vmem>>, %arg2: memref<8x72xf32, #tpu.memory_space<vmem>>, %arg3: memref<1x8x256xf32, #tpu.memory_space<vmem>>) attributes {dimension_semantics = [#tpu.dimension_semantics<parallel>], iteration_bounds = array<i64: 2>, scalar_prefetch = 0 : i64, scratch_operands = 0 : i64, tpu.core_type = #tpu.core_type<tc>, window_params = [{transform_indices = @transform_0, window_bounds = array<i64: 1, 72, 256>}, {pipeline_mode = #tpu.pipeline_mode<synchronous>, transform_indices = @transform_1, window_bounds = array<i64: 8, 72>}, {transform_indices = @transform_2, window_bounds = array<i64: 1, 8, 256>}]} {
    %c0 = arith.constant 0 : index
    %c0_0 = arith.constant 0 : index
    %0 = vector.load %arg2[%c0, %c0_0] : memref<8x72xf32, #tpu.memory_space<vmem>>, vector<8x72xf32>
    %c0_1 = arith.constant 0 : index
    %c0_2 = arith.constant 0 : index
    %c0_3 = arith.constant 0 : index
    %1 = vector.load %arg1[%c0_1, %c0_2, %c0_3] : memref<1x72x256xf32, #tpu.memory_space<vmem>>, vector<1x72x256xf32>
    %2 = vector.shape_cast %1 : vector<1x72x256xf32> to vector<72x256xf32>
    %cst = arith.constant dense<0.000000e+00> : vector<8x256xf32>
    %3 = tpu.matmul %0, %2, %cst {dimension_numbers = #tpu.dot_dimension_numbers<[1], [0], [0], [1], [0, 0, 1, 1], [], []>} : vector<8x72xf32>, vector<72x256xf32>, vector<8x256xf32> -> vector<8x256xf32>
    %cst_4 = arith.constant dense<0.000000e+00> : vector<8xf32>
    %4 = vector.multi_reduction <add>, %3, %cst_4 [1] : vector<8x256xf32> to vector<8xf32>
    %5 = vector.shape_cast %4 : vector<8xf32> to vector<8x1xf32>
    %cst_5 = arith.constant 2.560000e+02 : f32
    %6 = vector.broadcast %cst_5 : f32 to vector<8x1xf32>
    %7 = arith.divf %5, %6 : vector<8x1xf32>
    %8 = vector.broadcast %7 : vector<8x1xf32> to vector<8x256xf32>
    %9 = arith.subf %3, %8 : vector<8x256xf32>
    %10 = arith.mulf %9, %9 : vector<8x256xf32>
    %cst_6 = arith.constant dense<0.000000e+00> : vector<8xf32>
    %11 = vector.multi_reduction <add>, %10, %cst_6 [1] : vector<8x256xf32> to vector<8xf32>
    %12 = vector.shape_cast %11 : vector<8xf32> to vector<8x1xf32>
    %cst_7 = arith.constant 2.560000e+02 : f32
    %13 = vector.broadcast %cst_7 : f32 to vector<8x1xf32>
    %14 = arith.divf %12, %13 : vector<8x1xf32>
    %cst_8 = arith.constant 9.99999974E-6 : f32
    %15 = vector.broadcast %cst_8 : f32 to vector<8x1xf32>
    %16 = arith.addf %14, %15 : vector<8x1xf32>
    %17 = math.rsqrt %16 : vector<8x1xf32>
    %18 = vector.broadcast %17 : vector<8x1xf32> to vector<8x256xf32>
    %19 = arith.mulf %9, %18 : vector<8x256xf32>
    %cst_9 = arith.constant 0.000000e+00 : f32
    %20 = vector.broadcast %cst_9 : f32 to vector<8x256xf32>
    %21 = arith.cmpf ogt, %19, %20 : vector<8x256xf32>
    %cst_10 = arith.constant 0.000000e+00 : f32
    %22 = vector.broadcast %cst_10 : f32 to vector<8x256xf32>
    %23 = arith.minimumf %19, %22 : vector<8x256xf32>
    %24 = math.exp %23 : vector<8x256xf32>
    %cst_11 = arith.constant 1.000000e+00 : f32
    %25 = vector.broadcast %cst_11 : f32 to vector<8x256xf32>
    %26 = arith.subf %24, %25 : vector<8x256xf32>
    %27 = arith.select %21, %19, %26 : vector<8x256xi1>, vector<8x256xf32>
    %c0_12 = arith.constant 0 : index
    %c0_13 = arith.constant 0 : index
    %c0_14 = arith.constant 0 : index
    %28 = vector.load %arg3[%c0_12, %c0_13, %c0_14] : memref<1x8x256xf32, #tpu.memory_space<vmem>>, vector<1x8x256xf32>
    %29 = vector.shape_cast %28 : vector<1x8x256xf32> to vector<8x256xf32>
    %30 = vector.shape_cast %27 : vector<8x256xf32> to vector<1x8x256xf32>
    tpu.vector_store %arg3[%c0_12, %c0_13, %c0_14], %30 {strides = array<i32>} : memref<1x8x256xf32, #tpu.memory_space<vmem>>, vector<1x8x256xf32>,
    return
  }
  func.func @transform_0(%arg0: i32) -> (i32, i32, i32) {
    %c0_i32 = arith.constant 0 : i32
    %c0_i32_0 = arith.constant 0 : i32
    %c0_i32_1 = arith.constant 0 : i32
    return %arg0, %c0_i32, %c0_i32_0 : i32, i32, i32
  }
  func.func @transform_1(%arg0: i32) -> (i32, i32) {
    %c0_i32 = arith.constant 0 : i32
    %c0_i32_0 = arith.constant 0 : i32
    %c0_i32_1 = arith.constant 0 : i32
    return %c0_i32, %c0_i32_0 : i32, i32
  }
  func.func @transform_2(%arg0: i32) -> (i32, i32, i32) {
    %c0_i32 = arith.constant 0 : i32
    %c0_i32_0 = arith.constant 0 : i32
    %c0_i32_1 = arith.constant 0 : i32
    return %arg0, %c0_i32, %c0_i32_0 : i32, i32, i32
  }
}

module attributes {stable_mosaic.version = 11 : i64} {
  func.func @_conv_in_add_elu_kernel(%arg0: i32, %arg1: memref<1x72x256xf32, #tpu.memory_space<vmem>>, %arg2: memref<1x8x256xf32, #tpu.memory_space<vmem>>, %arg3: memref<8x72xf32, #tpu.memory_space<vmem>>, %arg4: memref<1x8x256xf32, #tpu.memory_space<vmem>>) attributes {dimension_semantics = [#tpu.dimension_semantics<parallel>], iteration_bounds = array<i64: 2>, scalar_prefetch = 0 : i64, scratch_operands = 0 : i64, tpu.core_type = #tpu.core_type<tc>, window_params = [{transform_indices = @transform_0, window_bounds = array<i64: 1, 72, 256>}, {transform_indices = @transform_1, window_bounds = array<i64: 1, 8, 256>}, {pipeline_mode = #tpu.pipeline_mode<synchronous>, transform_indices = @transform_2, window_bounds = array<i64: 8, 72>}, {transform_indices = @transform_3, window_bounds = array<i64: 1, 8, 256>}]} {
    %c0 = arith.constant 0 : index
    %c0_0 = arith.constant 0 : index
    %0 = vector.load %arg3[%c0, %c0_0] : memref<8x72xf32, #tpu.memory_space<vmem>>, vector<8x72xf32>
    %c0_1 = arith.constant 0 : index
    %c0_2 = arith.constant 0 : index
    %c0_3 = arith.constant 0 : index
    %1 = vector.load %arg1[%c0_1, %c0_2, %c0_3] : memref<1x72x256xf32, #tpu.memory_space<vmem>>, vector<1x72x256xf32>
    %2 = vector.shape_cast %1 : vector<1x72x256xf32> to vector<72x256xf32>
    %cst = arith.constant dense<0.000000e+00> : vector<8x256xf32>
    %3 = tpu.matmul %0, %2, %cst {dimension_numbers = #tpu.dot_dimension_numbers<[1], [0], [0], [1], [0, 0, 1, 1], [], []>} : vector<8x72xf32>, vector<72x256xf32>, vector<8x256xf32> -> vector<8x256xf32>
    %cst_4 = arith.constant dense<0.000000e+00> : vector<8xf32>
    %4 = vector.multi_reduction <add>, %3, %cst_4 [1] : vector<8x256xf32> to vector<8xf32>
    %5 = vector.shape_cast %4 : vector<8xf32> to vector<8x1xf32>
    %cst_5 = arith.constant 2.560000e+02 : f32
    %6 = vector.broadcast %cst_5 : f32 to vector<8x1xf32>
    %7 = arith.divf %5, %6 : vector<8x1xf32>
    %8 = vector.broadcast %7 : vector<8x1xf32> to vector<8x256xf32>
    %9 = arith.subf %3, %8 : vector<8x256xf32>
    %10 = arith.mulf %9, %9 : vector<8x256xf32>
    %cst_6 = arith.constant dense<0.000000e+00> : vector<8xf32>
    %11 = vector.multi_reduction <add>, %10, %cst_6 [1] : vector<8x256xf32> to vector<8xf32>
    %12 = vector.shape_cast %11 : vector<8xf32> to vector<8x1xf32>
    %cst_7 = arith.constant 2.560000e+02 : f32
    %13 = vector.broadcast %cst_7 : f32 to vector<8x1xf32>
    %14 = arith.divf %12, %13 : vector<8x1xf32>
    %cst_8 = arith.constant 9.99999974E-6 : f32
    %15 = vector.broadcast %cst_8 : f32 to vector<8x1xf32>
    %16 = arith.addf %14, %15 : vector<8x1xf32>
    %17 = math.rsqrt %16 : vector<8x1xf32>
    %18 = vector.broadcast %17 : vector<8x1xf32> to vector<8x256xf32>
    %19 = arith.mulf %9, %18 : vector<8x256xf32>
    %cst_9 = arith.constant 0.000000e+00 : f32
    %20 = vector.broadcast %cst_9 : f32 to vector<8x256xf32>
    %21 = arith.cmpf ogt, %19, %20 : vector<8x256xf32>
    %cst_10 = arith.constant 0.000000e+00 : f32
    %22 = vector.broadcast %cst_10 : f32 to vector<8x256xf32>
    %23 = arith.minimumf %19, %22 : vector<8x256xf32>
    %24 = math.exp %23 : vector<8x256xf32>
    %cst_11 = arith.constant 1.000000e+00 : f32
    %25 = vector.broadcast %cst_11 : f32 to vector<8x256xf32>
    %26 = arith.subf %24, %25 : vector<8x256xf32>
    %27 = arith.select %21, %19, %26 : vector<8x256xi1>, vector<8x256xf32>
    %c0_12 = arith.constant 0 : index
    %c0_13 = arith.constant 0 : index
    %c0_14 = arith.constant 0 : index
    %28 = vector.load %arg2[%c0_12, %c0_13, %c0_14] : memref<1x8x256xf32, #tpu.memory_space<vmem>>, vector<1x8x256xf32>
    %29 = vector.shape_cast %28 : vector<1x8x256xf32> to vector<8x256xf32>
    %30 = arith.addf %27, %29 : vector<8x256xf32>
    %cst_15 = arith.constant 0.000000e+00 : f32
    %31 = vector.broadcast %cst_15 : f32 to vector<8x256xf32>
    %32 = arith.cmpf ogt, %30, %31 : vector<8x256xf32>
    %cst_16 = arith.constant 0.000000e+00 : f32
    %33 = vector.broadcast %cst_16 : f32 to vector<8x256xf32>
    %34 = arith.minimumf %30, %33 : vector<8x256xf32>
    %35 = math.exp %34 : vector<8x256xf32>
    %cst_17 = arith.constant 1.000000e+00 : f32
    %36 = vector.broadcast %cst_17 : f32 to vector<8x256xf32>
    %37 = arith.subf %35, %36 : vector<8x256xf32>
    %38 = arith.select %32, %30, %37 : vector<8x256xi1>, vector<8x256xf32>
    %c0_18 = arith.constant 0 : index
    %c0_19 = arith.constant 0 : index
    %c0_20 = arith.constant 0 : index
    %39 = vector.load %arg4[%c0_18, %c0_19, %c0_20] : memref<1x8x256xf32, #tpu.memory_space<vmem>>, vector<1x8x256xf32>
    %40 = vector.shape_cast %39 : vector<1x8x256xf32> to vector<8x256xf32>
    %41 = vector.shape_cast %38 : vector<8x256xf32> to vector<1x8x256xf32>
    tpu.vector_store %arg4[%c0_18, %c0_19, %c0_20], %41 {strides = array<i32>} : memref<1x8x256xf32, #tpu.memory_space<vmem>>, vector<1x8x256xf32>,
    return
  }
  func.func @transform_0(%arg0: i32) -> (i32, i32, i32) {
    %c0_i32 = arith.constant 0 : i32
    %c0_i32_0 = arith.constant 0 : i32
    %c0_i32_1 = arith.constant 0 : i32
    return %arg0, %c0_i32, %c0_i32_0 : i32, i32, i32
  }
  func.func @transform_1(%arg0: i32) -> (i32, i32, i32) {
    %c0_i32 = arith.constant 0 : i32
    %c0_i32_0 = arith.constant 0 : i32
    %c0_i32_1 = arith.constant 0 : i32
    return %arg0, %c0_i32, %c0_i32_0 : i32, i32, i32
  }
  func.func @transform_2(%arg0: i32) -> (i32, i32) {
    %c0_i32 = arith.constant 0 : i32
    %c0_i32_0 = arith.constant 0 : i32
    %c0_i32_1 = arith.constant 0 : i32
    return %c0_i32, %c0_i32_0 : i32, i32
  }
  func.func @transform_3(%arg0: i32) -> (i32, i32, i32) {
    %c0_i32 = arith.constant 0 : i32
    %c0_i32_0 = arith.constant 0 : i32
    %c0_i32_1 = arith.constant 0 : i32
    return %arg0, %c0_i32, %c0_i32_0 : i32, i32, i32
  }
}

</mosaic_0001>

<llo_original>
// kernel: upconcat_forward.3
$region0: #{upconcat_forward.3}
  #allocation0 [shape = 'u32[]', space=smem, size = 0x4, offset = 0x4, fixed_abs, tag = 'smem constant byte address 0x4 - core index']
  #allocation1 [shape = 'u32[144,128]{1,0:T(1,128)}', space=vmem, size = 0x12000, scoped, tag = 'internal scratch']
  %s0 = inlined_call_operand.vmem [shape: f32[2,36,256], index: 0, kind: input, shape index: {}]
  %s1 = inlined_call_operand.vmem [shape: f32[4,36], index: 1, kind: input, shape index: {}]
  %s2 = inlined_call_operand.vmem [shape: f32[2,4,256], index: 2, kind: output, shape index: {}]
  %s3 = sld [smem:[#allocation0]]
  $region41: #{upconcat_forward.3} parent=0
    _
  %s5 = ssub.s32 1, %s3
  %s6 = scalar_select 0, %s5, %s3
  loop: start=0, step=1, limit=4
  $region2: #{upconcat_forward.3} parent=0 // loop_pre_header
    _
  $region3: #{upconcat_forward.3} parent=0 // loop_header
    %s8 = sphi 0, %s12
    %p9 = scmp.ge.s32.totalorder %s8, 4
    %s18 = sphi 0, %s20
    %s21 = sphi 0, %s18
    %s22 = sphi 0, %s21
    %s38 = sphi 0, %s22
    %s42 = sphi 0, %s42
    %s44 = sphi 0, %s42
    %s45 = sphi 0, %s44
    %s59 = sphi 0, %s45
    %s65 = sphi 0, %s67
    %s68 = sphi 0, %s65
    %s69 = sphi 0, %s68
    %s85 = sphi 0, %s69
  $region4: #{upconcat_forward.3} parent=0 // loop_header_branch
    %11 = sbr.rel (%p9) target = $region8
  $region5: #{upconcat_forward.3} parent=0 // loop_body
    %s13 = ssub.s32 %s8, 1
    %s14 = ssub.s32 %s8, 2
    %s15 = sadd.s32 %s8, 1
    %s16 = ssub.s32 %s8, %s15
    %p17 = scmp.eq.s32.totalorder %s16, 0
    %s19 = sadd.s32 %s18, 1
    %s20 = scalar_select %p17, %s18, %s19
    %p23 = pneg %p17
    %p24 = scmp.eq.s32.totalorder %s8, 1
    %p25 = por %p23, %p24
    %p26 = scmp.ne.s32.totalorder %s18, %s21
    %p27 = scmp.eq.s32.totalorder %s8, 0
    %p28 = por %p26, %p27
    %p29 = scmp.ne.s32.totalorder %s18, %s21
    %p30 = scmp.eq.s32.totalorder %s13, 1
    %p31 = por %p29, %p30
    %p32 = scmp.ne.s32.totalorder %s21, %s22
    %p33 = scmp.eq.s32.totalorder %s13, 0
    %p34 = por %p32, %p33
    %p35 = scmp.ne.s32.totalorder %s21, %s22
    %p36 = scmp.eq.s32.totalorder %s14, 1
    %p37 = por %p35, %p36
    %p39 = scmp.ne.s32.totalorder %s22, %s38
    %p40 = scmp.eq.s32.totalorder %s14, 0
    %p41 = por %p39, %p40
    %s43 = sadd.s32 %s42, 1
    %p46 = scmp.eq.s32.totalorder %s8, 1
    %p47 = scmp.ne.s32.totalorder %s42, %s44
    %p48 = scmp.eq.s32.totalorder %s8, 0
    %p49 = por %p47, %p48
    %p50 = scmp.ne.s32.totalorder %s42, %s44
    %p51 = scmp.eq.s32.totalorder %s13, 1
    %p52 = por %p50, %p51
    %p53 = scmp.ne.s32.totalorder %s44, %s45
    %p54 = scmp.eq.s32.totalorder %s13, 0
    %p55 = por %p53, %p54
    %p56 = scmp.ne.s32.totalorder %s44, %s45
    %p57 = scmp.eq.s32.totalorder %s14, 1
    %p58 = por %p56, %p57
    %p60 = scmp.ne.s32.totalorder %s45, %s59
    %p61 = scmp.eq.s32.totalorder %s14, 0
    %p62 = por %p60, %p61
    %s63 = ssub.s32 %s8, %s15
    %p64 = scmp.eq.s32.totalorder %s63, 0
    %s66 = sadd.s32 %s65, 1
    %s67 = scalar_select %p64, %s65, %s66
    %p70 = pneg %p64
    %p71 = scmp.eq.s32.totalorder %s8, 1
    %p72 = por %p70, %p71
    %p73 = scmp.ne.s32.totalorder %s65, %s68
    %p74 = scmp.eq.s32.totalorder %s8, 0
    %p75 = por %p73, %p74
    %p76 = scmp.ne.s32.totalorder %s65, %s68
    %p77 = scmp.eq.s32.totalorder %s13, 1
    %p78 = por %p76, %p77
    %p79 = scmp.ne.s32.totalorder %s68, %s69
    %p80 = scmp.eq.s32.totalorder %s13, 0
    %p81 = por %p79, %p80
    %p82 = scmp.ne.s32.totalorder %s68, %s69
    %p83 = scmp.eq.s32.totalorder %s14, 1
    %p84 = por %p82, %p83
    %p86 = scmp.ne.s32.totalorder %s69, %s85
    %p87 = scmp.eq.s32.totalorder %s14, 0
    %p88 = por %p86, %p87
    %p89 = scmp.le.s32.totalorder 1, %s8
    %p90 = scmp.lt.s32.totalorder %s8, 3
    %p91 = pnand %p89, %p90
    %p92 = pneg %p91
    // Predicated region
    $region9: #{upconcat_forward.3} parent=5 // pred_check
      _
    $region10: #{upconcat_forward.3} parent=5 // pred_check_branch
      %94 = sbr.rel (%p91) target = $region12
    $region11: #{upconcat_forward.3} parent=5 // pred_region
      %s95 = ssub.s32 %s8, 1
      // Predicated region
      $region13: #{upconcat_forward.3} parent=11 // pred_check
        %p96 = pneg %p55
      $region14: #{upconcat_forward.3} parent=11 // pred_check_branch
        %98 = sbr.rel (%p96) target = $region16
      $region15: #{upconcat_forward.3} parent=11 // pred_region
        _
      $region16: #{upconcat_forward.3} parent=11 // pred_fallthru
        _
    $region12: #{upconcat_forward.3} parent=5 // pred_fallthru
      _
    %p99 = scmp.lt.s32.totalorder %s8, 2
    // Predicated region
    $region17: #{upconcat_forward.3} parent=5 // pred_check
      %p100 = pneg %p99
    $region18: #{upconcat_forward.3} parent=5 // pred_check_branch
      %102 = sbr.rel (%p100) target = $region20
    $region19: #{upconcat_forward.3} parent=5 // pred_region
      // Predicated region
      $region21: #{upconcat_forward.3} parent=19 // pred_check
        %p103 = pneg %p28
      $region22: #{upconcat_forward.3} parent=19 // pred_check_branch
        %105 = sbr.rel (%p103) target = $region24
      $region23: #{upconcat_forward.3} parent=19 // pred_region
        %p106 = scmp.lt.s32.totalorder %s8, 1
        %s107 = scalar_select %p106, %s8, 1
        %s108 = smul.addr %s107, 10
        %s109 = smul.addr %s108, 8
        %s110 = scalar_lea.vmem %s0, %s109
      $region24: #{upconcat_forward.3} parent=19 // pred_fallthru
        _
    $region20: #{upconcat_forward.3} parent=5 // pred_fallthru
      _
    %p111 = scmp.le.s32.totalorder 1, %s8
    %p112 = scmp.lt.s32.totalorder %s8, 3
    %p113 = pnand %p111, %p112
    %p114 = pneg %p113
    // Predicated region
    $region25: #{upconcat_forward.3} parent=5 // pred_check
      _
    $region26: #{upconcat_forward.3} parent=5 // pred_check_branch
      %116 = sbr.rel (%p113) target = $region28
    $region27: #{upconcat_forward.3} parent=5 // pred_region
      %s117 = ssub.s32 %s8, 1
      %p118 = scmp.lt.s32.totalorder %s13, 1
      %s119 = scalar_select %p118, %s13, 1
      %s120 = smul.addr %s119, 10
      %s121 = smul.addr %s120, 8
      %s122 = scalar_lea.vmem %s0, %s121
      %p123 = pneg %p34
      %p124 = pneg %p31
      %p125 = pneg %p55
      %p126 = pneg %p52
      %p127 = pneg %p81
      %p128 = pneg %p78
      %p129 = scmp.lt.s32.totalorder %s13, 1
      %s130 = scalar_select %p129, %s13, 1
      %s131 = smul.addr %s130, 2
      %s132 = smul.addr %s131, 4
      %s133 = scalar_lea.vmem %s2, %s132
      %p134 = scmp.lt.s32.totalorder %s13, 1
      %s135 = scalar_select %p134, %s13, 1
      %s136 = smul.addr %s135, 10
      %s137 = smul.addr %s136, 8
      %s138 = scalar_lea.vmem %s0, %s137
      %p139 = scmp.lt.s32.totalorder %s13, 1
      %s140 = scalar_select %p139, %s13, 1
      %s141 = smul.addr %s140, 2
      %s142 = smul.addr %s141, 4
      %s143 = scalar_lea.vmem %s2, %s142
      %v144 = vld [vmem:[%s1] sm:$0xf]
      %v145 = vld [vmem:[%s138] sm:$0xff]
      %v146 = vld [vmem:[%s138 + $0x8] sm:$0xff]
      %v147 = vld [vmem:[%s138 + $0x10] sm:$0xff]
      %v148 = vld [vmem:[%s138 + $0x18] sm:$0xff]
      %v149 = vld [vmem:[%s138 + $0x20] sm:$0xff]
      %v150 = vld [vmem:[%s138 + $0x28] sm:$0xff]
      %v151 = vld [vmem:[%s138 + $0x30] sm:$0xff]
      %v152 = vld [vmem:[%s138 + $0x38] sm:$0xff]
      %v153 = vld [vmem:[%s138 + $0x40] sm:$0xf]
      %v154 = vld [vmem:[%s138 + $0x48] sm:$0xf]
      %vm155 = vcmask 293888
      %v157 = vsel %vm155, %v144, 0
      %vm159 = vcmask 1043456
      %v161 = vsel %vm159, %v153, 0
      %v164 = vsel %vm159, %v154, 0
      %166 = vmatprep.subr.mxu0 %v146
      %167 = vmatpush1.msra.mxu0 %v145
      %168 = vmatprep.subr.mxu0 %v148
      %169 = vmatpush1.msra.mxu0 %v147
      %170 = vmatprep.subr.mxu0 %v150
      %171 = vmatpush1.msra.mxu0 %v149
      %172 = vmatprep.subr.mxu0 %v152
      %173 = vmatpush1.msra.mxu0 %v151
      %174 = vmatprep.subr.mxu0 %v164
      %175 = vmatpush1.msra.mxu0 %v161
      %176 = vmatprep.subr.mxu0 0.0
      %177 = vmatpush1.msra.mxu0 0.0
      %178 = vmatprep.subr.mxu0 0.0
      %179 = vmatpush1.msra.mxu0 0.0
      %180 = vmatprep.subr.mxu0 0.0
      %181 = vmatpush1.msra.mxu0 0.0
      %182 = vmatprep.subr.mxu0 0.0
      %183 = vmatpush1.msra.mxu0 0.0
      %184 = vmatprep.subr.mxu0 0.0
      %185 = vmatpush1.msra.mxu0 0.0
      %186 = vmatprep.subr.mxu0 0.0
      %187 = vmatpush1.msra.mxu0 0.0
      %188 = vmatprep.subr.mxu0 0.0
      %189 = vmatpush1.msra.mxu0 0.0
      %190 = vmatprep.subr.mxu0 0.0
      %191 = vmatpush1.msra.mxu0 0.0
      %192 = vmatprep.subr.mxu0 0.0
      %193 = vmatpush1.msra.mxu0 0.0
      %194 = vmatprep.subr.mxu0 0.0
      %195 = vmatpush1.msra.mxu0 0.0
      %196 = vmatprep.subr.mxu0 0.0
      %197 = vmatpush1.msra.mxu0 0.0
      %198 = vmatprep.subr.mxu0 0.0
      %199 = vmatpush1.msra.mxu0 0.0
      %200 = vmatprep.subr.mxu0 0.0
      %201 = vmatpush1.msra.mxu0 0.0
      %202 = vmatprep.subr.mxu0 0.0
      %203 = vmatpush1.msra.mxu0 0.0
      %204 = vmatprep.subr.mxu0 0.0
      %205 = vmatpush1.msra.mxu0 0.0
      %206 = vmatprep.subr.mxu0 0.0
      %207 = vmatpush1.msra.mxu0 0.0
      %208 = vmatprep.subr.mxu0 0.0
      %209 = vmatpush1.msra.mxu0 0.0
      %210 = vmatprep.subr.mxu0 0.0
      %211 = vmatpush1.msra.mxu0 0.0
      %212 = vmatprep.subr.mxu0 0.0
      %213 = vmatpush1.msra.mxu0 0.0
      %214 = vmatprep.subr.mxu0 0.0
      %215 = vmatpush1.msra.mxu0 0.0
      %216 = vmatprep.subr.mxu0 0.0
      %217 = vmatpush1.msra.mxu0 0.0
      %218 = vmatprep.subr.mxu0 0.0
      %219 = vmatpush1.msra.mxu0 0.0
      %220 = vmatprep.subr.mxu0 0.0
      %221 = vmatpush1.msra.mxu0 0.0
      %222 = vmatprep.subr.mxu0 0.0
      %223 = vmatpush1.msra.mxu0 0.0
      %224 = vmatprep.subr.mxu0 0.0
      %225 = vmatpush1.msra.mxu0 0.0
      %226 = vmatprep.subr.mxu0 0.0
      %227 = vmatpush1.msra.mxu0 0.0
      %228 = vmatprep.subr.mxu0 0.0
      %229 = vmatpush1.msra.mxu0 0.0
      %230 = vmatprep.mubr.f32.mxu0 0.0
      %231 = vmatmul.mubr.f32.gmra.mrb[0].mxu0 %v157
      %v232 = vpop.f32.mrb[0].mxu0
      %v233 = vadd.f32 0.0, %v232
      %v234 = vpop.f32.mrb[0].mxu0
      %v235 = vadd.f32 0.0, %v234
      %236 = vdwg.mxu0
      %v237 = vsel %vm159, %v233, 0.0
      %v238 = vsel %vm159, %v235, 0.0
      %v239 = vadd.f32 %v237, %v238
      %240 = vadd.xlane.f32.xlu0 %v239
      %v241 = vpop.xlane.xlu0 %240
      %v242 = vrcp.pop 256.0
      %v243 = vmul.f32 %v241, %v242
      %v244 = vsub.f32 %v233, %v243
      %v245 = vsub.f32 %v235, %v243
      %v246 = vmul.f32 %v244, %v244
      %v247 = vmul.f32 %v245, %v245
      %v248 = vsel %vm159, %v246, 0.0
      %v249 = vsel %vm159, %v247, 0.0
      %v250 = vadd.f32 %v248, %v249
      %251 = vadd.xlane.f32.xlu0 %v250
      %v252 = vpop.xlane.xlu0 %251
      %v253 = vmul.f32 %v252, %v242
      %v254 = vadd.f32 %v253, 1e-05
      %v255 = vrsqrt.pop %v254
      %v256 = vmul.f32 %v244, %v255
      %v257 = vmul.f32 %v245, %v255
      %vm258 = vcmp.gt.f32.partialorder %v256, 0.0
      %vm259 = vcmp.gt.f32.partialorder %v257, 0.0
      %v260 = vmin.f32 %v256, 0.0
      %v261 = vmin.f32 %v257, 0.0
      %v262 = vmul.f32 %v260, 1.442695
      %v263 = vpow.pop %v262
      %v264 = vmul.f32 %v261, 1.442695
      %v265 = vpow.pop %v264
      %v266 = vsub.f32 %v263, 1.0
      %v267 = vsub.f32 %v265, 1.0
      %v268 = vsel %vm258, %v256, %v266
      %v269 = vsel %vm259, %v257, %v267
      %v272 = vcombine.low %v268, %v269
      %274 = vst [vmem:[%s143] sm:$0xff] %v272
      %p275 = scmp.lt.s32.totalorder %s13, 1
      %s276 = scalar_select %p275, %s13, 1
      %s277 = smul.addr %s276, 2
      %s278 = smul.addr %s277, 4
      %s279 = scalar_lea.vmem %s2, %s278
      // Predicated region
      $region29: #{upconcat_forward.3} parent=27 // pred_check
        %p280 = pneg %p78
      $region30: #{upconcat_forward.3} parent=27 // pred_check_branch
        %282 = sbr.rel (%p280) target = $region32
      $region31: #{upconcat_forward.3} parent=27 // pred_region
        _
      $region32: #{upconcat_forward.3} parent=27 // pred_fallthru
        _
    $region28: #{upconcat_forward.3} parent=5 // pred_fallthru
      _
    %p283 = scmp.le.s32.totalorder 2, %s8
    // Predicated region
    $region33: #{upconcat_forward.3} parent=5 // pred_check
      %p284 = pneg %p283
    $region34: #{upconcat_forward.3} parent=5 // pred_check_branch
      %286 = sbr.rel (%p284) target = $region36
    $region35: #{upconcat_forward.3} parent=5 // pred_region
      %s287 = ssub.s32 %s8, 2
      // Predicated region
      $region37: #{upconcat_forward.3} parent=35 // pred_check
        %p288 = pneg %p84
      $region38: #{upconcat_forward.3} parent=35 // pred_check_branch
        %290 = sbr.rel (%p288) target = $region40
      $region39: #{upconcat_forward.3} parent=35 // pred_region
        %p291 = scmp.lt.s32.totalorder %s14, 1
        %s292 = scalar_select %p291, %s14, 1
        %s293 = smul.addr %s292, 2
        %s294 = smul.addr %s293, 4
        %s295 = scalar_lea.vmem %s2, %s294
      $region40: #{upconcat_forward.3} parent=35 // pred_fallthru
        _
    $region36: #{upconcat_forward.3} parent=5 // pred_fallthru
      _
  $region6: #{upconcat_forward.3} parent=0 // loop_footer
    %s12 = sadd.s32 1, %s8
  $region7: #{upconcat_forward.3} parent=0 // loop_footer_branch
    %7 = sbr.rel target = $region3
  $region8: #{upconcat_forward.3} parent=0 // loop_exit
    _

// kernel: upconcat_forward.4
$region0: #{upconcat_forward.4}
  #allocation0 [shape = 'u32[]', space=smem, size = 0x4, offset = 0x4, fixed_abs, tag = 'smem constant byte address 0x4 - core index']
  #allocation1 [shape = 'u32[144,128]{1,0:T(1,128)}', space=vmem, size = 0x12000, scoped, tag = 'internal scratch']
  %s0 = inlined_call_operand.vmem [shape: f32[2,72,256], index: 0, kind: input, shape index: {}]
  %s1 = inlined_call_operand.vmem [shape: f32[8,72], index: 1, kind: input, shape index: {}]
  %s2 = inlined_call_operand.vmem [shape: f32[2,8,256], index: 2, kind: output, shape index: {}]
  %s3 = sld [smem:[#allocation0]]
  $region41: #{upconcat_forward.4} parent=0
    _
  %s5 = ssub.s32 1, %s3
  %s6 = scalar_select 0, %s5, %s3
  loop: start=0, step=1, limit=4
  $region2: #{upconcat_forward.4} parent=0 // loop_pre_header
    _
  $region3: #{upconcat_forward.4} parent=0 // loop_header
    %s8 = sphi 0, %s12
    %p9 = scmp.ge.s32.totalorder %s8, 4
    %s18 = sphi 0, %s20
    %s21 = sphi 0, %s18
    %s22 = sphi 0, %s21
    %s38 = sphi 0, %s22
    %s42 = sphi 0, %s42
    %s44 = sphi 0, %s42
    %s45 = sphi 0, %s44
    %s59 = sphi 0, %s45
    %s65 = sphi 0, %s67
    %s68 = sphi 0, %s65
    %s69 = sphi 0, %s68
    %s85 = sphi 0, %s69
  $region4: #{upconcat_forward.4} parent=0 // loop_header_branch
    %11 = sbr.rel (%p9) target = $region8
  $region5: #{upconcat_forward.4} parent=0 // loop_body
    %s13 = ssub.s32 %s8, 1
    %s14 = ssub.s32 %s8, 2
    %s15 = sadd.s32 %s8, 1
    %s16 = ssub.s32 %s8, %s15
    %p17 = scmp.eq.s32.totalorder %s16, 0
    %s19 = sadd.s32 %s18, 1
    %s20 = scalar_select %p17, %s18, %s19
    %p23 = pneg %p17
    %p24 = scmp.eq.s32.totalorder %s8, 1
    %p25 = por %p23, %p24
    %p26 = scmp.ne.s32.totalorder %s18, %s21
    %p27 = scmp.eq.s32.totalorder %s8, 0
    %p28 = por %p26, %p27
    %p29 = scmp.ne.s32.totalorder %s18, %s21
    %p30 = scmp.eq.s32.totalorder %s13, 1
    %p31 = por %p29, %p30
    %p32 = scmp.ne.s32.totalorder %s21, %s22
    %p33 = scmp.eq.s32.totalorder %s13, 0
    %p34 = por %p32, %p33
    %p35 = scmp.ne.s32.totalorder %s21, %s22
    %p36 = scmp.eq.s32.totalorder %s14, 1
    %p37 = por %p35, %p36
    %p39 = scmp.ne.s32.totalorder %s22, %s38
    %p40 = scmp.eq.s32.totalorder %s14, 0
    %p41 = por %p39, %p40
    %s43 = sadd.s32 %s42, 1
    %p46 = scmp.eq.s32.totalorder %s8, 1
    %p47 = scmp.ne.s32.totalorder %s42, %s44
    %p48 = scmp.eq.s32.totalorder %s8, 0
    %p49 = por %p47, %p48
    %p50 = scmp.ne.s32.totalorder %s42, %s44
    %p51 = scmp.eq.s32.totalorder %s13, 1
    %p52 = por %p50, %p51
    %p53 = scmp.ne.s32.totalorder %s44, %s45
    %p54 = scmp.eq.s32.totalorder %s13, 0
    %p55 = por %p53, %p54
    %p56 = scmp.ne.s32.totalorder %s44, %s45
    %p57 = scmp.eq.s32.totalorder %s14, 1
    %p58 = por %p56, %p57
    %p60 = scmp.ne.s32.totalorder %s45, %s59
    %p61 = scmp.eq.s32.totalorder %s14, 0
    %p62 = por %p60, %p61
    %s63 = ssub.s32 %s8, %s15
    %p64 = scmp.eq.s32.totalorder %s63, 0
    %s66 = sadd.s32 %s65, 1
    %s67 = scalar_select %p64, %s65, %s66
    %p70 = pneg %p64
    %p71 = scmp.eq.s32.totalorder %s8, 1
    %p72 = por %p70, %p71
    %p73 = scmp.ne.s32.totalorder %s65, %s68
    %p74 = scmp.eq.s32.totalorder %s8, 0
    %p75 = por %p73, %p74
    %p76 = scmp.ne.s32.totalorder %s65, %s68
    %p77 = scmp.eq.s32.totalorder %s13, 1
    %p78 = por %p76, %p77
    %p79 = scmp.ne.s32.totalorder %s68, %s69
    %p80 = scmp.eq.s32.totalorder %s13, 0
    %p81 = por %p79, %p80
    %p82 = scmp.ne.s32.totalorder %s68, %s69
    %p83 = scmp.eq.s32.totalorder %s14, 1
    %p84 = por %p82, %p83
    %p86 = scmp.ne.s32.totalorder %s69, %s85
    %p87 = scmp.eq.s32.totalorder %s14, 0
    %p88 = por %p86, %p87
    %p89 = scmp.le.s32.totalorder 1, %s8
    %p90 = scmp.lt.s32.totalorder %s8, 3
    %p91 = pnand %p89, %p90
    %p92 = pneg %p91
    // Predicated region
    $region9: #{upconcat_forward.4} parent=5 // pred_check
      _
    $region10: #{upconcat_forward.4} parent=5 // pred_check_branch
      %94 = sbr.rel (%p91) target = $region12
    $region11: #{upconcat_forward.4} parent=5 // pred_region
      %s95 = ssub.s32 %s8, 1
      // Predicated region
      $region13: #{upconcat_forward.4} parent=11 // pred_check
        %p96 = pneg %p55
      $region14: #{upconcat_forward.4} parent=11 // pred_check_branch
        %98 = sbr.rel (%p96) target = $region16
      $region15: #{upconcat_forward.4} parent=11 // pred_region
        _
      $region16: #{upconcat_forward.4} parent=11 // pred_fallthru
        _
    $region12: #{upconcat_forward.4} parent=5 // pred_fallthru
      _
    %p99 = scmp.lt.s32.totalorder %s8, 2
    // Predicated region
    $region17: #{upconcat_forward.4} parent=5 // pred_check
      %p100 = pneg %p99
    $region18: #{upconcat_forward.4} parent=5 // pred_check_branch
      %102 = sbr.rel (%p100) target = $region20
    $region19: #{upconcat_forward.4} parent=5 // pred_region
      // Predicated region
      $region21: #{upconcat_forward.4} parent=19 // pred_check
        %p103 = pneg %p28
      $region22: #{upconcat_forward.4} parent=19 // pred_check_branch
        %105 = sbr.rel (%p103) target = $region24
      $region23: #{upconcat_forward.4} parent=19 // pred_region
        %p106 = scmp.lt.s32.totalorder %s8, 1
        %s107 = scalar_select %p106, %s8, 1
        %s108 = smul.addr %s107, 18
        %s109 = smul.addr %s108, 8
        %s110 = scalar_lea.vmem %s0, %s109
      $region24: #{upconcat_forward.4} parent=19 // pred_fallthru
        _
    $region20: #{upconcat_forward.4} parent=5 // pred_fallthru
      _
    %p111 = scmp.le.s32.totalorder 1, %s8
    %p112 = scmp.lt.s32.totalorder %s8, 3
    %p113 = pnand %p111, %p112
    %p114 = pneg %p113
    // Predicated region
    $region25: #{upconcat_forward.4} parent=5 // pred_check
      _
    $region26: #{upconcat_forward.4} parent=5 // pred_check_branch
      %116 = sbr.rel (%p113) target = $region28
    $region27: #{upconcat_forward.4} parent=5 // pred_region
      %s117 = ssub.s32 %s8, 1
      %p118 = scmp.lt.s32.totalorder %s13, 1
      %s119 = scalar_select %p118, %s13, 1
      %s120 = smul.addr %s119, 18
      %s121 = smul.addr %s120, 8
      %s122 = scalar_lea.vmem %s0, %s121
      %p123 = pneg %p34
      %p124 = pneg %p31
      %p125 = pneg %p55
      %p126 = pneg %p52
      %p127 = pneg %p81
      %p128 = pneg %p78
      %p129 = scmp.lt.s32.totalorder %s13, 1
      %s130 = scalar_select %p129, %s13, 1
      %s131 = smul.addr %s130, 2
      %s132 = smul.addr %s131, 8
      %s133 = scalar_lea.vmem %s2, %s132
      %p134 = scmp.lt.s32.totalorder %s13, 1
      %s135 = scalar_select %p134, %s13, 1
      %s136 = smul.addr %s135, 18
      %s137 = smul.addr %s136, 8
      %s138 = scalar_lea.vmem %s0, %s137
      %p139 = scmp.lt.s32.totalorder %s13, 1
      %s140 = scalar_select %p139, %s13, 1
      %s141 = smul.addr %s140, 2
      %s142 = smul.addr %s141, 8
      %s143 = scalar_lea.vmem %s2, %s142
      %v144 = vld [vmem:[%s1] sm:$0xff]
      %v145 = vld [vmem:[%s138] sm:$0xff]
      %v146 = vld [vmem:[%s138 + $0x8] sm:$0xff]
      %v147 = vld [vmem:[%s138 + $0x10] sm:$0xff]
      %v148 = vld [vmem:[%s138 + $0x18] sm:$0xff]
      %v149 = vld [vmem:[%s138 + $0x20] sm:$0xff]
      %v150 = vld [vmem:[%s138 + $0x28] sm:$0xff]
      %v151 = vld [vmem:[%s138 + $0x30] sm:$0xff]
      %v152 = vld [vmem:[%s138 + $0x38] sm:$0xff]
      %v153 = vld [vmem:[%s138 + $0x40] sm:$0xff]
      %v154 = vld [vmem:[%s138 + $0x48] sm:$0xff]
      %v155 = vld [vmem:[%s138 + $0x50] sm:$0xff]
      %v156 = vld [vmem:[%s138 + $0x58] sm:$0xff]
      %v157 = vld [vmem:[%s138 + $0x60] sm:$0xff]
      %v158 = vld [vmem:[%s138 + $0x68] sm:$0xff]
      %v159 = vld [vmem:[%s138 + $0x70] sm:$0xff]
      %v160 = vld [vmem:[%s138 + $0x78] sm:$0xff]
      %v161 = vld [vmem:[%s138 + $0x80] sm:$0xff]
      %v162 = vld [vmem:[%s138 + $0x88] sm:$0xff]
      %vm163 = vcmask 588800
      %v165 = vsel %vm163, %v144, 0
      %167 = vmatprep.subr.mxu0 %v146
      %168 = vmatpush1.msra.mxu0 %v145
      %169 = vmatprep.subr.mxu0 %v148
      %170 = vmatpush1.msra.mxu0 %v147
      %171 = vmatprep.subr.mxu0 %v150
      %172 = vmatpush1.msra.mxu0 %v149
      %173 = vmatprep.subr.mxu0 %v152
      %174 = vmatpush1.msra.mxu0 %v151
      %175 = vmatprep.subr.mxu0 %v154
      %176 = vmatpush1.msra.mxu0 %v153
      %177 = vmatprep.subr.mxu0 %v156
      %178 = vmatpush1.msra.mxu0 %v155
      %179 = vmatprep.subr.mxu0 %v158
      %180 = vmatpush1.msra.mxu0 %v157
      %181 = vmatprep.subr.mxu0 %v160
      %182 = vmatpush1.msra.mxu0 %v159
      %183 = vmatprep.subr.mxu0 %v162
      %184 = vmatpush1.msra.mxu0 %v161
      %185 = vmatprep.subr.mxu0 0.0
      %186 = vmatpush1.msra.mxu0 0.0
      %187 = vmatprep.subr.mxu0 0.0
      %188 = vmatpush1.msra.mxu0 0.0
      %189 = vmatprep.subr.mxu0 0.0
      %190 = vmatpush1.msra.mxu0 0.0
      %191 = vmatprep.subr.mxu0 0.0
      %192 = vmatpush1.msra.mxu0 0.0
      %193 = vmatprep.subr.mxu0 0.0
      %194 = vmatpush1.msra.mxu0 0.0
      %195 = vmatprep.subr.mxu0 0.0
      %196 = vmatpush1.msra.mxu0 0.0
      %197 = vmatprep.subr.mxu0 0.0
      %198 = vmatpush1.msra.mxu0 0.0
      %199 = vmatprep.subr.mxu0 0.0
      %200 = vmatpush1.msra.mxu0 0.0
      %201 = vmatprep.subr.mxu0 0.0
      %202 = vmatpush1.msra.mxu0 0.0
      %203 = vmatprep.subr.mxu0 0.0
      %204 = vmatpush1.msra.mxu0 0.0
      %205 = vmatprep.subr.mxu0 0.0
      %206 = vmatpush1.msra.mxu0 0.0
      %207 = vmatprep.subr.mxu0 0.0
      %208 = vmatpush1.msra.mxu0 0.0
      %209 = vmatprep.subr.mxu0 0.0
      %210 = vmatpush1.msra.mxu0 0.0
      %211 = vmatprep.subr.mxu0 0.0
      %212 = vmatpush1.msra.mxu0 0.0
      %213 = vmatprep.subr.mxu0 0.0
      %214 = vmatpush1.msra.mxu0 0.0
      %215 = vmatprep.subr.mxu0 0.0
      %216 = vmatpush1.msra.mxu0 0.0
      %217 = vmatprep.subr.mxu0 0.0
      %218 = vmatpush1.msra.mxu0 0.0
      %219 = vmatprep.subr.mxu0 0.0
      %220 = vmatpush1.msra.mxu0 0.0
      %221 = vmatprep.subr.mxu0 0.0
      %222 = vmatpush1.msra.mxu0 0.0
      %223 = vmatprep.subr.mxu0 0.0
      %224 = vmatpush1.msra.mxu0 0.0
      %225 = vmatprep.subr.mxu0 0.0
      %226 = vmatpush1.msra.mxu0 0.0
      %227 = vmatprep.subr.mxu0 0.0
      %228 = vmatpush1.msra.mxu0 0.0
      %229 = vmatprep.subr.mxu0 0.0
      %230 = vmatpush1.msra.mxu0 0.0
      %231 = vmatprep.mubr.f32.mxu0 0.0
      %232 = vmatmul.mubr.f32.gmra.mrb[0].mxu0 %v165
      %v233 = vpop.f32.mrb[0].mxu0
      %v234 = vadd.f32 0.0, %v233
      %v235 = vpop.f32.mrb[0].mxu0
      %v236 = vadd.f32 0.0, %v235
      %237 = vdwg.mxu0
      %v238 = vadd.f32 %v234, %v236
      %239 = vadd.xlane.f32.xlu0 %v238
      %v240 = vpop.xlane.xlu0 %239
      %v241 = vrcp.pop 256.0
      %v242 = vmul.f32 %v240, %v241
      %v243 = vsub.f32 %v234, %v242
      %v244 = vsub.f32 %v236, %v242
      %v245 = vmul.f32 %v243, %v243
      %v246 = vmul.f32 %v244, %v244
      %v247 = vadd.f32 %v245, %v246
      %248 = vadd.xlane.f32.xlu0 %v247
      %v249 = vpop.xlane.xlu0 %248
      %v250 = vmul.f32 %v249, %v241
      %v251 = vadd.f32 %v250, 1e-05
      %v252 = vrsqrt.pop %v251
      %v253 = vmul.f32 %v243, %v252
      %v254 = vmul.f32 %v244, %v252
      %vm255 = vcmp.gt.f32.partialorder %v253, 0.0
      %vm256 = vcmp.gt.f32.partialorder %v254, 0.0
      %v257 = vmin.f32 %v253, 0.0
      %v258 = vmin.f32 %v254, 0.0
      %v259 = vmul.f32 %v257, 1.442695
      %v260 = vpow.pop %v259
      %v261 = vmul.f32 %v258, 1.442695
      %v262 = vpow.pop %v261
      %v263 = vsub.f32 %v260, 1.0
      %v264 = vsub.f32 %v262, 1.0
      %v265 = vsel %vm255, %v253, %v263
      %v266 = vsel %vm256, %v254, %v264
      %267 = vst [vmem:[%s143] sm:$0xff] %v265
      %268 = vst [vmem:[%s143 + $0x8] sm:$0xff] %v266
      %p269 = scmp.lt.s32.totalorder %s13, 1
      %s270 = scalar_select %p269, %s13, 1
      %s271 = smul.addr %s270, 2
      %s272 = smul.addr %s271, 8
      %s273 = scalar_lea.vmem %s2, %s272
      // Predicated region
      $region29: #{upconcat_forward.4} parent=27 // pred_check
        %p274 = pneg %p78
      $region30: #{upconcat_forward.4} parent=27 // pred_check_branch
        %276 = sbr.rel (%p274) target = $region32
      $region31: #{upconcat_forward.4} parent=27 // pred_region
        _
      $region32: #{upconcat_forward.4} parent=27 // pred_fallthru
        _
    $region28: #{upconcat_forward.4} parent=5 // pred_fallthru
      _
    %p277 = scmp.le.s32.totalorder 2, %s8
    // Predicated region
    $region33: #{upconcat_forward.4} parent=5 // pred_check
      %p278 = pneg %p277
    $region34: #{upconcat_forward.4} parent=5 // pred_check_branch
      %280 = sbr.rel (%p278) target = $region36
    $region35: #{upconcat_forward.4} parent=5 // pred_region
      %s281 = ssub.s32 %s8, 2
      // Predicated region
      $region37: #{upconcat_forward.4} parent=35 // pred_check
        %p282 = pneg %p84
      $region38: #{upconcat_forward.4} parent=35 // pred_check_branch
        %284 = sbr.rel (%p282) target = $region40
      $region39: #{upconcat_forward.4} parent=35 // pred_region
        %p285 = scmp.lt.s32.totalorder %s14, 1
        %s286 = scalar_select %p285, %s14, 1
        %s287 = smul.addr %s286, 2
        %s288 = smul.addr %s287, 8
        %s289 = scalar_lea.vmem %s2, %s288
      $region40: #{upconcat_forward.4} parent=35 // pred_fallthru
        _
    $region36: #{upconcat_forward.4} parent=5 // pred_fallthru
      _
  $region6: #{upconcat_forward.4} parent=0 // loop_footer
    %s12 = sadd.s32 1, %s8
  $region7: #{upconcat_forward.4} parent=0 // loop_footer_branch
    %7 = sbr.rel target = $region3
  $region8: #{upconcat_forward.4} parent=0 // loop_exit
    _

// kernel: upconcat_forward.5
$region0: #{upconcat_forward.5}
  #allocation0 [shape = 'u32[]', space=smem, size = 0x4, offset = 0x4, fixed_abs, tag = 'smem constant byte address 0x4 - core index']
  #allocation1 [shape = 'u32[144,128]{1,0:T(1,128)}', space=vmem, size = 0x12000, scoped, tag = 'internal scratch']
  %s0 = inlined_call_operand.vmem [shape: f32[2,72,256], index: 0, kind: input, shape index: {}]
  %s1 = inlined_call_operand.vmem [shape: f32[2,8,256], index: 1, kind: input, shape index: {}]
  %s2 = inlined_call_operand.vmem [shape: f32[8,72], index: 2, kind: input, shape index: {}]
  %s3 = inlined_call_operand.vmem [shape: f32[2,8,256], index: 3, kind: output, shape index: {}]
  %s4 = sld [smem:[#allocation0]]
  $region45: #{upconcat_forward.5} parent=0
    _
  %s6 = ssub.s32 1, %s4
  %s7 = scalar_select 0, %s6, %s4
  loop: start=0, step=1, limit=4
  $region2: #{upconcat_forward.5} parent=0 // loop_pre_header
    _
  $region3: #{upconcat_forward.5} parent=0 // loop_header
    %s9 = sphi 0, %s13
    %p10 = scmp.ge.s32.totalorder %s9, 4
    %s19 = sphi 0, %s21
    %s22 = sphi 0, %s19
    %s23 = sphi 0, %s22
    %s39 = sphi 0, %s23
    %s45 = sphi 0, %s47
    %s48 = sphi 0, %s45
    %s49 = sphi 0, %s48
    %s65 = sphi 0, %s49
    %s69 = sphi 0, %s69
    %s71 = sphi 0, %s69
    %s72 = sphi 0, %s71
    %s86 = sphi 0, %s72
    %s92 = sphi 0, %s94
    %s95 = sphi 0, %s92
    %s96 = sphi 0, %s95
    %s112 = sphi 0, %s96
  $region4: #{upconcat_forward.5} parent=0 // loop_header_branch
    %12 = sbr.rel (%p10) target = $region8
  $region5: #{upconcat_forward.5} parent=0 // loop_body
    %s14 = ssub.s32 %s9, 1
    %s15 = ssub.s32 %s9, 2
    %s16 = sadd.s32 %s9, 1
    %s17 = ssub.s32 %s9, %s16
    %p18 = scmp.eq.s32.totalorder %s17, 0
    %s20 = sadd.s32 %s19, 1
    %s21 = scalar_select %p18, %s19, %s20
    %p24 = pneg %p18
    %p25 = scmp.eq.s32.totalorder %s9, 1
    %p26 = por %p24, %p25
    %p27 = scmp.ne.s32.totalorder %s19, %s22
    %p28 = scmp.eq.s32.totalorder %s9, 0
    %p29 = por %p27, %p28
    %p30 = scmp.ne.s32.totalorder %s19, %s22
    %p31 = scmp.eq.s32.totalorder %s14, 1
    %p32 = por %p30, %p31
    %p33 = scmp.ne.s32.totalorder %s22, %s23
    %p34 = scmp.eq.s32.totalorder %s14, 0
    %p35 = por %p33, %p34
    %p36 = scmp.ne.s32.totalorder %s22, %s23
    %p37 = scmp.eq.s32.totalorder %s15, 1
    %p38 = por %p36, %p37
    %p40 = scmp.ne.s32.totalorder %s23, %s39
    %p41 = scmp.eq.s32.totalorder %s15, 0
    %p42 = por %p40, %p41
    %s43 = ssub.s32 %s9, %s16
    %p44 = scmp.eq.s32.totalorder %s43, 0
    %s46 = sadd.s32 %s45, 1
    %s47 = scalar_select %p44, %s45, %s46
    %p50 = pneg %p44
    %p51 = scmp.eq.s32.totalorder %s9, 1
    %p52 = por %p50, %p51
    %p53 = scmp.ne.s32.totalorder %s45, %s48
    %p54 = scmp.eq.s32.totalorder %s9, 0
    %p55 = por %p53, %p54
    %p56 = scmp.ne.s32.totalorder %s45, %s48
    %p57 = scmp.eq.s32.totalorder %s14, 1
    %p58 = por %p56, %p57
    %p59 = scmp.ne.s32.totalorder %s48, %s49
    %p60 = scmp.eq.s32.totalorder %s14, 0
    %p61 = por %p59, %p60
    %p62 = scmp.ne.s32.totalorder %s48, %s49
    %p63 = scmp.eq.s32.totalorder %s15, 1
    %p64 = por %p62, %p63
    %p66 = scmp.ne.s32.totalorder %s49, %s65
    %p67 = scmp.eq.s32.totalorder %s15, 0
    %p68 = por %p66, %p67
    %s70 = sadd.s32 %s69, 1
    %p73 = scmp.eq.s32.totalorder %s9, 1
    %p74 = scmp.ne.s32.totalorder %s69, %s71
    %p75 = scmp.eq.s32.totalorder %s9, 0
    %p76 = por %p74, %p75
    %p77 = scmp.ne.s32.totalorder %s69, %s71
    %p78 = scmp.eq.s32.totalorder %s14, 1
    %p79 = por %p77, %p78
    %p80 = scmp.ne.s32.totalorder %s71, %s72
    %p81 = scmp.eq.s32.totalorder %s14, 0
    %p82 = por %p80, %p81
    %p83 = scmp.ne.s32.totalorder %s71, %s72
    %p84 = scmp.eq.s32.totalorder %s15, 1
    %p85 = por %p83, %p84
    %p87 = scmp.ne.s32.totalorder %s72, %s86
    %p88 = scmp.eq.s32.totalorder %s15, 0
    %p89 = por %p87, %p88
    %s90 = ssub.s32 %s9, %s16
    %p91 = scmp.eq.s32.totalorder %s90, 0
    %s93 = sadd.s32 %s92, 1
    %s94 = scalar_select %p91, %s92, %s93
    %p97 = pneg %p91
    %p98 = scmp.eq.s32.totalorder %s9, 1
    %p99 = por %p97, %p98
    %p100 = scmp.ne.s32.totalorder %s92, %s95
    %p101 = scmp.eq.s32.totalorder %s9, 0
    %p102 = por %p100, %p101
    %p103 = scmp.ne.s32.totalorder %s92, %s95
    %p104 = scmp.eq.s32.totalorder %s14, 1
    %p105 = por %p103, %p104
    %p106 = scmp.ne.s32.totalorder %s95, %s96
    %p107 = scmp.eq.s32.totalorder %s14, 0
    %p108 = por %p106, %p107
    %p109 = scmp.ne.s32.totalorder %s95, %s96
    %p110 = scmp.eq.s32.totalorder %s15, 1
    %p111 = por %p109, %p110
    %p113 = scmp.ne.s32.totalorder %s96, %s112
    %p114 = scmp.eq.s32.totalorder %s15, 0
    %p115 = por %p113, %p114
    %p116 = scmp.le.s32.totalorder 1, %s9
    %p117 = scmp.lt.s32.totalorder %s9, 3
    %p118 = pnand %p116, %p117
    %p119 = pneg %p118
    // Predicated region
    $region9: #{upconcat_forward.5} parent=5 // pred_check
      _
    $region10: #{upconcat_forward.5} parent=5 // pred_check_branch
      %121 = sbr.rel (%p118) target = $region12
    $region11: #{upconcat_forward.5} parent=5 // pred_region
      %s122 = ssub.s32 %s9, 1
      // Predicated region
      $region13: #{upconcat_forward.5} parent=11 // pred_check
        %p123 = pneg %p82
      $region14: #{upconcat_forward.5} parent=11 // pred_check_branch
        %125 = sbr.rel (%p123) target = $region16
      $region15: #{upconcat_forward.5} parent=11 // pred_region
        _
      $region16: #{upconcat_forward.5} parent=11 // pred_fallthru
        _
    $region12: #{upconcat_forward.5} parent=5 // pred_fallthru
      _
    %p126 = scmp.lt.s32.totalorder %s9, 2
    // Predicated region
    $region17: #{upconcat_forward.5} parent=5 // pred_check
      %p127 = pneg %p126
    $region18: #{upconcat_forward.5} parent=5 // pred_check_branch
      %129 = sbr.rel (%p127) target = $region20
    $region19: #{upconcat_forward.5} parent=5 // pred_region
      // Predicated region
      $region21: #{upconcat_forward.5} parent=19 // pred_check
        %p130 = pneg %p29
      $region22: #{upconcat_forward.5} parent=19 // pred_check_branch
        %132 = sbr.rel (%p130) target = $region24
      $region23: #{upconcat_forward.5} parent=19 // pred_region
        %p133 = scmp.lt.s32.totalorder %s9, 1
        %s134 = scalar_select %p133, %s9, 1
        %s135 = smul.addr %s134, 18
        %s136 = smul.addr %s135, 8
        %s137 = scalar_lea.vmem %s0, %s136
      $region24: #{upconcat_forward.5} parent=19 // pred_fallthru
        _
      // Predicated region
      $region25: #{upconcat_forward.5} parent=19 // pred_check
        %p138 = pneg %p55
      $region26: #{upconcat_forward.5} parent=19 // pred_check_branch
        %140 = sbr.rel (%p138) target = $region28
      $region27: #{upconcat_forward.5} parent=19 // pred_region
        %p141 = scmp.lt.s32.totalorder %s9, 1
        %s142 = scalar_select %p141, %s9, 1
        %s143 = smul.addr %s142, 2
        %s144 = smul.addr %s143, 8
        %s145 = scalar_lea.vmem %s1, %s144
      $region28: #{upconcat_forward.5} parent=19 // pred_fallthru
        _
    $region20: #{upconcat_forward.5} parent=5 // pred_fallthru
      _
    %p146 = scmp.le.s32.totalorder 1, %s9
    %p147 = scmp.lt.s32.totalorder %s9, 3
    %p148 = pnand %p146, %p147
    %p149 = pneg %p148
    // Predicated region
    $region29: #{upconcat_forward.5} parent=5 // pred_check
      _
    $region30: #{upconcat_forward.5} parent=5 // pred_check_branch
      %151 = sbr.rel (%p148) target = $region32
    $region31: #{upconcat_forward.5} parent=5 // pred_region
      %s152 = ssub.s32 %s9, 1
      %p153 = scmp.lt.s32.totalorder %s14, 1
      %s154 = scalar_select %p153, %s14, 1
      %s155 = smul.addr %s154, 18
      %s156 = smul.addr %s155, 8
      %s157 = scalar_lea.vmem %s0, %s156
      %p158 = pneg %p35
      %p159 = pneg %p32
      %p160 = scmp.lt.s32.totalorder %s14, 1
      %s161 = scalar_select %p160, %s14, 1
      %s162 = smul.addr %s161, 2
      %s163 = smul.addr %s162, 8
      %s164 = scalar_lea.vmem %s1, %s163
      %p165 = pneg %p61
      %p166 = pneg %p58
      %p167 = pneg %p82
      %p168 = pneg %p79
      %p169 = pneg %p108
      %p170 = pneg %p105
      %p171 = scmp.lt.s32.totalorder %s14, 1
      %s172 = scalar_select %p171, %s14, 1
      %s173 = smul.addr %s172, 2
      %s174 = smul.addr %s173, 8
      %s175 = scalar_lea.vmem %s3, %s174
      %p176 = scmp.lt.s32.totalorder %s14, 1
      %s177 = scalar_select %p176, %s14, 1
      %s178 = smul.addr %s177, 18
      %s179 = smul.addr %s178, 8
      %s180 = scalar_lea.vmem %s0, %s179
      %p181 = scmp.lt.s32.totalorder %s14, 1
      %s182 = scalar_select %p181, %s14, 1
      %s183 = smul.addr %s182, 2
      %s184 = smul.addr %s183, 8
      %s185 = scalar_lea.vmem %s1, %s184
      %p186 = scmp.lt.s32.totalorder %s14, 1
      %s187 = scalar_select %p186, %s14, 1
      %s188 = smul.addr %s187, 2
      %s189 = smul.addr %s188, 8
      %s190 = scalar_lea.vmem %s3, %s189
      %v191 = vld [vmem:[%s2] sm:$0xff]
      %v192 = vld [vmem:[%s180] sm:$0xff]
      %v193 = vld [vmem:[%s180 + $0x8] sm:$0xff]
      %v194 = vld [vmem:[%s180 + $0x10] sm:$0xff]
      %v195 = vld [vmem:[%s180 + $0x18] sm:$0xff]
      %v196 = vld [vmem:[%s180 + $0x20] sm:$0xff]
      %v197 = vld [vmem:[%s180 + $0x28] sm:$0xff]
      %v198 = vld [vmem:[%s180 + $0x30] sm:$0xff]
      %v199 = vld [vmem:[%s180 + $0x38] sm:$0xff]
      %v200 = vld [vmem:[%s180 + $0x40] sm:$0xff]
      %v201 = vld [vmem:[%s180 + $0x48] sm:$0xff]
      %v202 = vld [vmem:[%s180 + $0x50] sm:$0xff]
      %v203 = vld [vmem:[%s180 + $0x58] sm:$0xff]
      %v204 = vld [vmem:[%s180 + $0x60] sm:$0xff]
      %v205 = vld [vmem:[%s180 + $0x68] sm:$0xff]
      %v206 = vld [vmem:[%s180 + $0x70] sm:$0xff]
      %v207 = vld [vmem:[%s180 + $0x78] sm:$0xff]
      %v208 = vld [vmem:[%s180 + $0x80] sm:$0xff]
      %v209 = vld [vmem:[%s180 + $0x88] sm:$0xff]
      %vm210 = vcmask 588800
      %v212 = vsel %vm210, %v191, 0
      %214 = vmatprep.subr.mxu0 %v193
      %215 = vmatpush1.msra.mxu0 %v192
      %216 = vmatprep.subr.mxu0 %v195
      %217 = vmatpush1.msra.mxu0 %v194
      %218 = vmatprep.subr.mxu0 %v197
      %219 = vmatpush1.msra.mxu0 %v196
      %220 = vmatprep.subr.mxu0 %v199
      %221 = vmatpush1.msra.mxu0 %v198
      %222 = vmatprep.subr.mxu0 %v201
      %223 = vmatpush1.msra.mxu0 %v200
      %224 = vmatprep.subr.mxu0 %v203
      %225 = vmatpush1.msra.mxu0 %v202
      %226 = vmatprep.subr.mxu0 %v205
      %227 = vmatpush1.msra.mxu0 %v204
      %228 = vmatprep.subr.mxu0 %v207
      %229 = vmatpush1.msra.mxu0 %v206
      %230 = vmatprep.subr.mxu0 %v209
      %231 = vmatpush1.msra.mxu0 %v208
      %232 = vmatprep.subr.mxu0 0.0
      %233 = vmatpush1.msra.mxu0 0.0
      %234 = vmatprep.subr.mxu0 0.0
      %235 = vmatpush1.msra.mxu0 0.0
      %236 = vmatprep.subr.mxu0 0.0
      %237 = vmatpush1.msra.mxu0 0.0
      %238 = vmatprep.subr.mxu0 0.0
      %239 = vmatpush1.msra.mxu0 0.0
      %240 = vmatprep.subr.mxu0 0.0
      %241 = vmatpush1.msra.mxu0 0.0
      %242 = vmatprep.subr.mxu0 0.0
      %243 = vmatpush1.msra.mxu0 0.0
      %244 = vmatprep.subr.mxu0 0.0
      %245 = vmatpush1.msra.mxu0 0.0
      %246 = vmatprep.subr.mxu0 0.0
      %247 = vmatpush1.msra.mxu0 0.0
      %248 = vmatprep.subr.mxu0 0.0
      %249 = vmatpush1.msra.mxu0 0.0
      %250 = vmatprep.subr.mxu0 0.0
      %251 = vmatpush1.msra.mxu0 0.0
      %252 = vmatprep.subr.mxu0 0.0
      %253 = vmatpush1.msra.mxu0 0.0
      %254 = vmatprep.subr.mxu0 0.0
      %255 = vmatpush1.msra.mxu0 0.0
      %256 = vmatprep.subr.mxu0 0.0
      %257 = vmatpush1.msra.mxu0 0.0
      %258 = vmatprep.subr.mxu0 0.0
      %259 = vmatpush1.msra.mxu0 0.0
      %260 = vmatprep.subr.mxu0 0.0
      %261 = vmatpush1.msra.mxu0 0.0
      %262 = vmatprep.subr.mxu0 0.0
      %263 = vmatpush1.msra.mxu0 0.0
      %264 = vmatprep.subr.mxu0 0.0
      %265 = vmatpush1.msra.mxu0 0.0
      %266 = vmatprep.subr.mxu0 0.0
      %267 = vmatpush1.msra.mxu0 0.0
      %268 = vmatprep.subr.mxu0 0.0
      %269 = vmatpush1.msra.mxu0 0.0
      %270 = vmatprep.subr.mxu0 0.0
      %271 = vmatpush1.msra.mxu0 0.0
      %272 = vmatprep.subr.mxu0 0.0
      %273 = vmatpush1.msra.mxu0 0.0
      %274 = vmatprep.subr.mxu0 0.0
      %275 = vmatpush1.msra.mxu0 0.0
      %276 = vmatprep.subr.mxu0 0.0
      %277 = vmatpush1.msra.mxu0 0.0
      %278 = vmatprep.mubr.f32.mxu0 0.0
      %279 = vmatmul.mubr.f32.gmra.mrb[0].mxu0 %v212
      %v280 = vpop.f32.mrb[0].mxu0
      %v281 = vadd.f32 0.0, %v280
      %v282 = vpop.f32.mrb[0].mxu0
      %v283 = vadd.f32 0.0, %v282
      %284 = vdwg.mxu0
      %v285 = vadd.f32 %v281, %v283
      %286 = vadd.xlane.f32.xlu0 %v285
      %v287 = vpop.xlane.xlu0 %286
      %v288 = vrcp.pop 256.0
      %v289 = vmul.f32 %v287, %v288
      %v290 = vsub.f32 %v281, %v289
      %v291 = vsub.f32 %v283, %v289
      %v292 = vmul.f32 %v290, %v290
      %v293 = vmul.f32 %v291, %v291
      %v294 = vadd.f32 %v292, %v293
      %295 = vadd.xlane.f32.xlu0 %v294
      %v296 = vpop.xlane.xlu0 %295
      %v297 = vmul.f32 %v296, %v288
      %v298 = vadd.f32 %v297, 1e-05
      %v299 = vrsqrt.pop %v298
      %v300 = vmul.f32 %v290, %v299
      %v301 = vmul.f32 %v291, %v299
      %vm302 = vcmp.gt.f32.partialorder %v300, 0.0
      %vm303 = vcmp.gt.f32.partialorder %v301, 0.0
      %v304 = vmin.f32 %v300, 0.0
      %v305 = vmin.f32 %v301, 0.0
      %v306 = vmul.f32 %v304, 1.442695
      %v307 = vpow.pop %v306
      %v308 = vmul.f32 %v305, 1.442695
      %v309 = vpow.pop %v308
      %v310 = vsub.f32 %v307, 1.0
      %v311 = vsub.f32 %v309, 1.0
      %v312 = vsel %vm302, %v300, %v310
      %v313 = vsel %vm303, %v301, %v311
      %v314 = vld [vmem:[%s185] sm:$0xff]
      %v315 = vld [vmem:[%s185 + $0x8] sm:$0xff]
      %v316 = vadd.f32 %v312, %v314
      %v317 = vadd.f32 %v313, %v315
      %vm318 = vcmp.gt.f32.partialorder %v316, 0.0
      %vm319 = vcmp.gt.f32.partialorder %v317, 0.0
      %v320 = vmin.f32 %v316, 0.0
      %v321 = vmin.f32 %v317, 0.0
      %v322 = vmul.f32 %v320, 1.442695
      %v323 = vpow.pop %v322
      %v324 = vmul.f32 %v321, 1.442695
      %v325 = vpow.pop %v324
      %v326 = vsub.f32 %v323, 1.0
      %v327 = vsub.f32 %v325, 1.0
      %v328 = vsel %vm318, %v316, %v326
      %v329 = vsel %vm319, %v317, %v327
      %330 = vst [vmem:[%s190] sm:$0xff] %v328
      %331 = vst [vmem:[%s190 + $0x8] sm:$0xff] %v329
      %p332 = scmp.lt.s32.totalorder %s14, 1
      %s333 = scalar_select %p332, %s14, 1
      %s334 = smul.addr %s333, 2
      %s335 = smul.addr %s334, 8
      %s336 = scalar_lea.vmem %s3, %s335
      // Predicated region
      $region33: #{upconcat_forward.5} parent=31 // pred_check
        %p337 = pneg %p105
      $region34: #{upconcat_forward.5} parent=31 // pred_check_branch
        %339 = sbr.rel (%p337) target = $region36
      $region35: #{upconcat_forward.5} parent=31 // pred_region
        _
      $region36: #{upconcat_forward.5} parent=31 // pred_fallthru
        _
    $region32: #{upconcat_forward.5} parent=5 // pred_fallthru
      _
    %p340 = scmp.le.s32.totalorder 2, %s9
    // Predicated region
    $region37: #{upconcat_forward.5} parent=5 // pred_check
      %p341 = pneg %p340
    $region38: #{upconcat_forward.5} parent=5 // pred_check_branch
      %343 = sbr.rel (%p341) target = $region40
    $region39: #{upconcat_forward.5} parent=5 // pred_region
      %s344 = ssub.s32 %s9, 2
      // Predicated region
      $region41: #{upconcat_forward.5} parent=39 // pred_check
        %p345 = pneg %p111
      $region42: #{upconcat_forward.5} parent=39 // pred_check_branch
        %347 = sbr.rel (%p345) target = $region44
      $region43: #{upconcat_forward.5} parent=39 // pred_region
        %p348 = scmp.lt.s32.totalorder %s15, 1
        %s349 = scalar_select %p348, %s15, 1
        %s350 = smul.addr %s349, 2
        %s351 = smul.addr %s350, 8
        %s352 = scalar_lea.vmem %s3, %s351
      $region44: #{upconcat_forward.5} parent=39 // pred_fallthru
        _
    $region40: #{upconcat_forward.5} parent=5 // pred_fallthru
      _
  $region6: #{upconcat_forward.5} parent=0 // loop_footer
    %s13 = sadd.s32 1, %s9
  $region7: #{upconcat_forward.5} parent=0 // loop_footer_branch
    %8 = sbr.rel target = $region3
  $region8: #{upconcat_forward.5} parent=0 // loop_exit
    _

</llo_original>
